<compile_context>
chip_gen: v6e
topology: v6e:2x2x1
jax: 0.10.0
libtpu: 0.0.40
codegen_flags: <defaults>
</compile_context>

<pallas_src>
import functools

import jax
import jax.numpy as jnp
from jax.experimental import pallas as pl
from jax.experimental.pallas import tpu as pltpu


def _resnet1d_block_kernel(x_ref, w1_ref, w2_ref, bn_ref, *rest, K, pad, L,
                           has_projection, matmul_dtype):
    """One grid step = one (C, Wt) lane-slab of the batch-folded input.

    x_ref  : (C_in, Wt)    Wt = batch_tile * L (batch folded into lanes)
    w1_ref : (C_out, KC1p) tap-fused conv1 weights (K*C_in padded to mult of 8)
    w2_ref : (C_out, KC2p) tap-fused conv2 weights
    bn_ref : (C_out, 4|6)  folded BN columns [s1, b1, s2, b2, (s_sc, b_sc)]
    ws_ref : (C_out, C_in) 1x1 shortcut weights (only when has_projection)
    o_ref  : (C_out, Wt)
    """
    if has_projection:
        ws_ref, o_ref = rest
    else:
        (o_ref,) = rest

    x = x_ref[...]
    Wt = x.shape[-1]

    # Per-sample lane position and edge masks: computed ONCE, reused by both
    # convs (JAX does not CSE broadcasted_iota / the compares).
    lane_pos = jax.lax.broadcasted_iota(jnp.int32, (1, Wt), 1) % L
    edge_masks = {}
    for k in range(K):
        shift = pad - k
        if shift != 0:
            src = lane_pos - shift                       # in-sample source index
            edge_masks[shift] = (src >= 0) & (src < L)

    def stacked_taps(inp, rows):
        """(C, Wt) -> (rows, Wt): K shifted/masked copies stacked along sublanes,
        zero-padded so the contraction dim matches the fused weight width."""
        pieces = []
        for k in range(K):
            shift = pad - k
            if shift == 0:
                pieces.append(inp)
            else:
                rolled = pltpu.roll(inp, shift=shift % Wt, axis=1)  # XLU lane rotate
                pieces.append(jnp.where(edge_masks[shift], rolled,
                                        jnp.zeros_like(rolled)))
        kc = K * inp.shape[0]
        if rows > kc:
            pieces.append(jnp.zeros((rows - kc, Wt), inp.dtype))
        return jnp.concatenate(pieces, axis=0)

    # conv1 (single fused MXU matmul over all K taps) -> bn1 -> relu
    x_mm = x.astype(matmul_dtype)
    h = jnp.dot(w1_ref[...], stacked_taps(x_mm, w1_ref.shape[1]),
                preferred_element_type=jnp.float32)
    h = jnp.maximum(h * bn_ref[:, 0:1] + bn_ref[:, 1:2], 0.0)

    # conv2 -> bn2
    out = jnp.dot(w2_ref[...], stacked_taps(h.astype(matmul_dtype), w2_ref.shape[1]),
                  preferred_element_type=jnp.float32)
    out = out * bn_ref[:, 2:3] + bn_ref[:, 3:4]

    # shortcut: 1x1 conv + bn, or identity
    if has_projection:
        sc = jnp.dot(ws_ref[...], x_mm, preferred_element_type=jnp.float32)
        sc = sc * bn_ref[:, 4:5] + bn_ref[:, 5:6]
    else:
        sc = x.astype(jnp.float32)

    o_ref[...] = jnp.maximum(out + sc, 0.0).astype(o_ref.dtype)


def _fold_bn(gamma, beta, mean, var, eps):
    scale = gamma.astype(jnp.float32) / jnp.sqrt(var.astype(jnp.float32) + eps)
    bias = beta.astype(jnp.float32) - mean.astype(jnp.float32) * scale
    return scale, bias


def _fuse_taps(conv_w, matmul_dtype):
    """(C_out, C_in, K) PyTorch layout -> (C_out, round_up(K*C_in, 8)).

    Column order is k*C_in + c so it matches the kernel's stacked-tap input."""
    c_out, c_in, k = conv_w.shape
    w = jnp.transpose(conv_w, (0, 2, 1)).reshape(c_out, k * c_in)
    kc_pad = ((k * c_in + 7) // 8) * 8
    if kc_pad > k * c_in:
        w = jnp.pad(w, ((0, 0), (0, kc_pad - k * c_in)))
    return w.astype(matmul_dtype)


def _pick_batch_tile(B, L):
    # Fewer, fatter, lane-dense steps: smallest batch tile giving >= 512 lanes
    # per step; otherwise take the whole batch in one step.  (With >= 2 steps
    # the "parallel" grid axis can shard across v7x's two TensorCores.)
    for bt in range(1, B + 1):
        if B % bt == 0 and bt * L >= 512:
            return bt
    return B


def resnet1d_block(x, conv1_w, bn1, conv2_w, bn2, shortcut_w=None, shortcut_bn=None,
                   *, eps=1e-5, matmul_dtype=jnp.bfloat16, batch_tile=None):
    """x: (B, C_in, L); conv*_w: (C_out, C_in, K) PyTorch layout; bn* = (gamma, beta, mean, var)."""
    B, C_in, L = x.shape
    C_out, _, K = conv1_w.shape
    pad = K // 2

    has_projection = shortcut_w is not None
    if not has_projection:
        assert C_in == C_out, "identity shortcut requires in_channels == out_channels"
    assert L % 128 == 0, "L must be a multiple of 128 (lane-dense kernel)"

    if batch_tile is None:
        batch_tile = _pick_batch_tile(B, L)
    assert B % batch_tile == 0
    Wt = batch_tile * L
    num_steps = B // batch_tile

    # Fold batch into the lane axis: (B, C, L) -> (C, B*L).
    x_folded = jnp.transpose(x, (1, 0, 2)).reshape(C_in, B * L)

    # Tap-fused weights and folded (eval-mode) BN params.
    w1 = _fuse_taps(conv1_w, matmul_dtype)
    w2 = _fuse_taps(conv2_w, matmul_dtype)
    s1, b1 = _fold_bn(*bn1, eps)
    s2, b2 = _fold_bn(*bn2, eps)
    bn_cols = [s1, b1, s2, b2]
    if has_projection:
        ss, bs = _fold_bn(*shortcut_bn, eps)
        bn_cols += [ss, bs]
    bn_stack = jnp.stack(bn_cols, axis=1)               # (C_out, 4|6) f32

    operands = [x_folded, w1, w2, bn_stack]
    const = lambda s: (0, 0)
    in_specs = [
        pl.BlockSpec((C_in, Wt), lambda s: (0, s)),      # input lane slab per step
        pl.BlockSpec(w1.shape, const),                   # resident fused weights
        pl.BlockSpec(w2.shape, const),
        pl.BlockSpec(bn_stack.shape, const),             # all BN params, one tile
    ]
    if has_projection:
        ws = shortcut_w[:, :, 0].astype(matmul_dtype)    # (C_out, C_in)
        operands.append(ws)
        in_specs.append(pl.BlockSpec(ws.shape, const))

    kernel = functools.partial(_resnet1d_block_kernel, K=K, pad=pad, L=L,
                               has_projection=has_projection, matmul_dtype=matmul_dtype)

    out_folded = pl.pallas_call(
        kernel,
        out_shape=jax.ShapeDtypeStruct((C_out, B * L), x.dtype),
        grid=(num_steps,),
        in_specs=in_specs,
        out_specs=pl.BlockSpec((C_out, Wt), lambda s: (0, s)),
        compiler_params=pltpu.CompilerParams(
            dimension_semantics=("parallel",),
            vmem_limit_bytes=32 * 1024 * 1024),
    )(*operands)

    return jnp.transpose(out_folded.reshape(C_out, B, L), (1, 0, 2))


def _reference(x, conv1_w, bn1, conv2_w, bn2, shortcut_w=None, shortcut_bn=None, eps=1e-5):
    # Pure-JAX reference mirroring the PyTorch forward (eval-mode BN), f32 throughout.
    def bn(y, params):
        gamma, beta, mean, var = params
        scale = gamma / jnp.sqrt(var + eps)
        return (y - mean[None, :, None]) * scale[None, :, None] + beta[None, :, None]

    def conv(y, w, pad):
        return jax.lax.conv_general_dilated(
            y.astype(jnp.float32), w.astype(jnp.float32),
            window_strides=(1,), padding=[(pad, pad)],
            dimension_numbers=("NCH", "OIH", "NCH"),
            precision=jax.lax.Precision.HIGHEST)

    out = jax.nn.relu(bn(conv(x, conv1_w, 1), bn1))
    out = bn(conv(out, conv2_w, 1), bn2)
    sc = bn(conv(x, shortcut_w, 0), shortcut_bn) if shortcut_w is not None else x
    return jax.nn.relu(out + sc)


if __name__ == "__main__":
    key = jax.random.PRNGKey(0)
    ks = jax.random.split(key, 12)

    B, C_in, C_out, L, K = 2, 4, 8, 128, 3

    def uniform(k, shape, bound):
        return jax.random.uniform(k, shape, jnp.float32, minval=-bound, maxval=bound)

    def bn_params(k, c):
        kg, kb, km, kv = jax.random.split(k, 4)
        gamma = jax.random.uniform(kg, (c,), jnp.float32, minval=0.5, maxval=1.5)
        beta = 0.1 * jax.random.normal(kb, (c,), dtype=jnp.float32)
        mean = 0.1 * jax.random.normal(km, (c,), dtype=jnp.float32)
        var = jax.random.uniform(kv, (c,), jnp.float32, minval=0.5, maxval=1.5)
        return gamma, beta, mean, var

    # --- Block with projection shortcut (C_in != C_out), PyTorch-style init ---
    x = jax.random.normal(ks[0], (B, C_in, L), dtype=jnp.float32)
    conv1_w = uniform(ks[1], (C_out, C_in, K), (C_in * K) ** -0.5)
    conv2_w = uniform(ks[2], (C_out, C_out, K), (C_out * K) ** -0.5)
    shortcut_w = uniform(ks[3], (C_out, C_in, 1), (C_in * 1) ** -0.5)
    bn1, bn2, bn_sc = bn_params(ks[4], C_out), bn_params(ks[5], C_out), bn_params(ks[6], C_out)

    ref = _reference(x, conv1_w, bn1, conv2_w, bn2, shortcut_w, bn_sc)

    # f32-matmul path: tight check (catches BN-fold / tap-layout bugs).
    out_f32 = resnet1d_block(x, conv1_w, bn1, conv2_w, bn2, shortcut_w, bn_sc,
                             matmul_dtype=jnp.float32)
    out_f32 = jax.block_until_ready(out_f32)
    assert out_f32.shape == (B, C_out, L) and out_f32.dtype == x.dtype
    err = float(jnp.max(jnp.abs(out_f32 - ref)))
    assert jnp.allclose(out_f32, ref, atol=5e-3, rtol=5e-3), f"f32 path mismatch (max abs err {err})"

    # Default bf16-matmul path (v6e/v7x-friendly): looser tolerance.
    out_bf16 = resnet1d_block(x, conv1_w, bn1, conv2_w, bn2, shortcut_w, bn_sc)
    out_bf16 = jax.block_until_ready(out_bf16)
    err = float(jnp.max(jnp.abs(out_bf16 - ref)))
    assert jnp.allclose(out_bf16, ref, atol=5e-2, rtol=5e-2), f"bf16 path mismatch (max abs err {err})"

    # --- Block with identity shortcut (C_in == C_out): exercises the no-projection path ---
    Ci = C_out
    x2 = jax.random.normal(ks[7], (B, Ci, L), dtype=jnp.float32)
    c1 = uniform(ks[8], (Ci, Ci, K), (Ci * K) ** -0.5)
    c2 = uniform(ks[9], (Ci, Ci, K), (Ci * K) ** -0.5)
    bna, bnb = bn_params(ks[10], Ci), bn_params(ks[11], Ci)

    out_id = resnet1d_block(x2, c1, bna, c2, bnb, matmul_dtype=jnp.float32)
    out_id = jax.block_until_ready(out_id)
    ref_id = _reference(x2, c1, bna, c2, bnb)
    err = float(jnp.max(jnp.abs(out_id - ref_id)))
    assert out_id.shape == (B, Ci, L)
    assert jnp.allclose(out_id, ref_id, atol=5e-3, rtol=5e-3), f"identity path mismatch (max abs err {err})"

    print("KERNEL_OK")
</pallas_src>

<mosaic_0001>
module attributes {stable_mosaic.version = 11 : i64} {
  func.func @_resnet1d_block_kernel(%arg0: i32, %arg1: memref<4x256xf32, #tpu.memory_space<vmem>>, %arg2: memref<8x16xf32, #tpu.memory_space<vmem>>, %arg3: memref<8x24xf32, #tpu.memory_space<vmem>>, %arg4: memref<8x6xf32, #tpu.memory_space<vmem>>, %arg5: memref<8x4xf32, #tpu.memory_space<vmem>>, %arg6: memref<8x256xf32, #tpu.memory_space<vmem>>) attributes {dimension_semantics = [#tpu.dimension_semantics<parallel>], iteration_bounds = array<i64: 1>, scalar_prefetch = 0 : i64, scratch_operands = 0 : i64, tpu.core_type = #tpu.core_type<tc>, window_params = [{transform_indices = @transform_0, window_bounds = array<i64: 4, 256>}, {pipeline_mode = #tpu.pipeline_mode<synchronous>, transform_indices = @transform_1, window_bounds = array<i64: 8, 16>}, {pipeline_mode = #tpu.pipeline_mode<synchronous>, transform_indices = @transform_2, window_bounds = array<i64: 8, 24>}, {pipeline_mode = #tpu.pipeline_mode<synchronous>, transform_indices = @transform_3, window_bounds = array<i64: 8, 6>}, {pipeline_mode = #tpu.pipeline_mode<synchronous>, transform_indices = @transform_4, window_bounds = array<i64: 8, 4>}, {transform_indices = @transform_5, window_bounds = array<i64: 8, 256>}]} {
    %c0 = arith.constant 0 : index
    %c0_0 = arith.constant 0 : index
    %0 = vector.load %arg1[%c0, %c0_0] : memref<4x256xf32, #tpu.memory_space<vmem>>, vector<4x256xf32>
    %1 = tpu.iota {dimensions = array<i32: 1>} : vector<1x256xi32>
    %c128_i32 = arith.constant 128 : i32
    %c0_i32 = arith.constant 0 : i32
    %2 = arith.cmpi eq, %c128_i32, %c0_i32 : i32
    %c1_i32 = arith.constant 1 : i32
    %3 = arith.select %2, %c1_i32, %c128_i32 : i32
    %4 = vector.broadcast %3 : i32 to vector<1x256xi32>
    %5 = arith.remsi %1, %4 : vector<1x256xi32>
    %c0_i32_1 = arith.constant 0 : i32
    %6 = vector.broadcast %c0_i32_1 : i32 to vector<1x256xi32>
    %7 = arith.cmpi ne, %5, %6 : vector<1x256xi32>
    %c0_i32_2 = arith.constant 0 : i32
    %8 = vector.broadcast %c0_i32_2 : i32 to vector<1x256xi32>
    %9 = arith.cmpi slt, %5, %8 : vector<1x256xi32>
    %c0_i32_3 = arith.constant 0 : i32
    %10 = arith.cmpi slt, %3, %c0_i32_3 : i32
    %11 = vector.broadcast %10 : i1 to vector<1x256xi1>
    %12 = vector.broadcast %11 : vector<1x256xi1> to vector<1x256xi1>
    %13 = arith.xori %9, %12 : vector<1x256xi1>
    %14 = arith.andi %13, %7 : vector<1x256xi1>
    %15 = vector.broadcast %3 : i32 to vector<1x256xi32>
    %16 = arith.addi %5, %15 : vector<1x256xi32>
    %17 = arith.select %14, %16, %5 : vector<1x256xi1>, vector<1x256xi32>
    %c1_i32_4 = arith.constant 1 : i32
    %18 = vector.broadcast %c1_i32_4 : i32 to vector<1x256xi32>
    %19 = arith.subi %17, %18 : vector<1x256xi32>
    %c0_i32_5 = arith.constant 0 : i32
    %20 = vector.broadcast %c0_i32_5 : i32 to vector<1x256xi32>
    %21 = arith.cmpi sge, %19, %20 : vector<1x256xi32>
    %c128_i32_6 = arith.constant 128 : i32
    %22 = vector.broadcast %c128_i32_6 : i32 to vector<1x256xi32>
    %23 = arith.cmpi slt, %19, %22 : vector<1x256xi32>
    %24 = arith.andi %21, %23 : vector<1x256xi1>
    %c-1_i32 = arith.constant -1 : i32
    %25 = vector.broadcast %c-1_i32 : i32 to vector<1x256xi32>
    %26 = arith.subi %17, %25 : vector<1x256xi32>
    %c0_i32_7 = arith.constant 0 : i32
    %27 = vector.broadcast %c0_i32_7 : i32 to vector<1x256xi32>
    %28 = arith.cmpi sge, %26, %27 : vector<1x256xi32>
    %c128_i32_8 = arith.constant 128 : i32
    %29 = vector.broadcast %c128_i32_8 : i32 to vector<1x256xi32>
    %30 = arith.cmpi slt, %26, %29 : vector<1x256xi32>
    %31 = arith.andi %28, %30 : vector<1x256xi1>
    %c0_9 = arith.constant 0 : index
    %c0_10 = arith.constant 0 : index
    %32 = vector.load %arg2[%c0_9, %c0_10] : memref<8x16xf32, #tpu.memory_space<vmem>>, vector<8x16xf32>
    %c1_i32_11 = arith.constant 1 : i32
    %33 = tpu.dynamic_rotate %0 by %c1_i32_11 dim 1 : vector<4x256xf32>, i32 -> vector<4x256xf32>
    %cst = arith.constant 0.000000e+00 : f32
    %34 = vector.broadcast %cst : f32 to vector<4x256xf32>
    %35 = vector.shape_cast %24 : vector<1x256xi1> to vector<1x256xi1>
    %36 = vector.broadcast %35 : vector<1x256xi1> to vector<4x256xi1>
    %37 = arith.select %36, %33, %34 : vector<4x256xi1>, vector<4x256xf32>
    %c255_i32 = arith.constant 255 : i32
    %38 = tpu.dynamic_rotate %0 by %c255_i32 dim 1 : vector<4x256xf32>, i32 -> vector<4x256xf32>
    %cst_12 = arith.constant 0.000000e+00 : f32
    %39 = vector.broadcast %cst_12 : f32 to vector<4x256xf32>
    %40 = vector.shape_cast %31 : vector<1x256xi1> to vector<1x256xi1>
    %41 = vector.broadcast %40 : vector<1x256xi1> to vector<4x256xi1>
    %42 = arith.select %41, %38, %39 : vector<4x256xi1>, vector<4x256xf32>
    %cst_13 = arith.constant 0.000000e+00 : f32
    %43 = vector.broadcast %cst_13 : f32 to vector<4x256xf32>
    %44 = tpu.concatenate %37, %0, %42, %43 in 0 : vector<4x256xf32>, vector<4x256xf32>, vector<4x256xf32>, vector<4x256xf32> -> vector<16x256xf32>
    %cst_14 = arith.constant dense<0.000000e+00> : vector<8x256xf32>
    %45 = tpu.matmul %32, %44, %cst_14 {dimension_numbers = #tpu.dot_dimension_numbers<[1], [0], [0], [1], [0, 0, 1, 1], [], []>} : vector<8x16xf32>, vector<16x256xf32>, vector<8x256xf32> -> vector<8x256xf32>
    %c0_15 = arith.constant 0 : index
    %c0_16 = arith.constant 0 : index
    %46 = vector.load %arg4[%c0_15, %c0_16] : memref<8x6xf32, #tpu.memory_space<vmem>>, vector<8x1xf32>
    %47 = vector.broadcast %46 : vector<8x1xf32> to vector<8x256xf32>
    %48 = arith.mulf %45, %47 : vector<8x256xf32>
    %c0_17 = arith.constant 0 : index
    %c1 = arith.constant 1 : index
    %49 = vector.load %arg4[%c0_17, %c1] : memref<8x6xf32, #tpu.memory_space<vmem>>, vector<8x1xf32>
    %50 = vector.broadcast %49 : vector<8x1xf32> to vector<8x256xf32>
    %51 = arith.addf %48, %50 : vector<8x256xf32>
    %cst_18 = arith.constant 0.000000e+00 : f32
    %52 = vector.broadcast %cst_18 : f32 to vector<8x256xf32>
    %53 = arith.maximumf %51, %52 : vector<8x256xf32>
    %c0_19 = arith.constant 0 : index
    %c0_20 = arith.constant 0 : index
    %54 = vector.load %arg3[%c0_19, %c0_20] : memref<8x24xf32, #tpu.memory_space<vmem>>, vector<8x24xf32>
    %c1_i32_21 = arith.constant 1 : i32
    %55 = tpu.dynamic_rotate %53 by %c1_i32_21 dim 1 : vector<8x256xf32>, i32 -> vector<8x256xf32>
    %cst_22 = arith.constant 0.000000e+00 : f32
    %56 = vector.broadcast %cst_22 : f32 to vector<8x256xf32>
    %57 = vector.shape_cast %24 : vector<1x256xi1> to vector<1x256xi1>
    %58 = vector.broadcast %57 : vector<1x256xi1> to vector<8x256xi1>
    %59 = arith.select %58, %55, %56 : vector<8x256xi1>, vector<8x256xf32>
    %c255_i32_23 = arith.constant 255 : i32
    %60 = tpu.dynamic_rotate %53 by %c255_i32_23 dim 1 : vector<8x256xf32>, i32 -> vector<8x256xf32>
    %cst_24 = arith.constant 0.000000e+00 : f32
    %61 = vector.broadcast %cst_24 : f32 to vector<8x256xf32>
    %62 = vector.shape_cast %31 : vector<1x256xi1> to vector<1x256xi1>
    %63 = vector.broadcast %62 : vector<1x256xi1> to vector<8x256xi1>
    %64 = arith.select %63, %60, %61 : vector<8x256xi1>, vector<8x256xf32>
    %65 = tpu.concatenate %59, %53, %64 in 0 : vector<8x256xf32>, vector<8x256xf32>, vector<8x256xf32> -> vector<24x256xf32>
    %cst_25 = arith.constant dense<0.000000e+00> : vector<8x256xf32>
    %66 = tpu.matmul %54, %65, %cst_25 {dimension_numbers = #tpu.dot_dimension_numbers<[1], [0], [0], [1], [0, 0, 1, 1], [], []>} : vector<8x24xf32>, vector<24x256xf32>, vector<8x256xf32> -> vector<8x256xf32>
    %c0_26 = arith.constant 0 : index
    %c2 = arith.constant 2 : index
    %67 = vector.load %arg4[%c0_26, %c2] : memref<8x6xf32, #tpu.memory_space<vmem>>, vector<8x1xf32>
    %68 = vector.broadcast %67 : vector<8x1xf32> to vector<8x256xf32>
    %69 = arith.mulf %66, %68 : vector<8x256xf32>
    %c0_27 = arith.constant 0 : index
    %c3 = arith.constant 3 : index
    %70 = vector.load %arg4[%c0_27, %c3] : memref<8x6xf32, #tpu.memory_space<vmem>>, vector<8x1xf32>
    %71 = vector.broadcast %70 : vector<8x1xf32> to vector<8x256xf32>
    %72 = arith.addf %69, %71 : vector<8x256xf32>
    %c0_28 = arith.constant 0 : index
    %c0_29 = arith.constant 0 : index
    %73 = vector.load %arg5[%c0_28, %c0_29] : memref<8x4xf32, #tpu.memory_space<vmem>>, vector<8x4xf32>
    %cst_30 = arith.constant dense<0.000000e+00> : vector<8x256xf32>
    %74 = tpu.matmul %73, %0, %cst_30 {dimension_numbers = #tpu.dot_dimension_numbers<[1], [0], [0], [1], [0, 0, 1, 1], [], []>} : vector<8x4xf32>, vector<4x256xf32>, vector<8x256xf32> -> vector<8x256xf32>
    %c0_31 = arith.constant 0 : index
    %c4 = arith.constant 4 : index
    %75 = vector.load %arg4[%c0_31, %c4] : memref<8x6xf32, #tpu.memory_space<vmem>>, vector<8x1xf32>
    %76 = vector.broadcast %75 : vector<8x1xf32> to vector<8x256xf32>
    %77 = arith.mulf %74, %76 : vector<8x256xf32>
    %c0_32 = arith.constant 0 : index
    %c5 = arith.constant 5 : index
    %78 = vector.load %arg4[%c0_32, %c5] : memref<8x6xf32, #tpu.memory_space<vmem>>, vector<8x1xf32>
    %79 = vector.broadcast %78 : vector<8x1xf32> to vector<8x256xf32>
    %80 = arith.addf %77, %79 : vector<8x256xf32>
    %81 = arith.addf %72, %80 : vector<8x256xf32>
    %cst_33 = arith.constant 0.000000e+00 : f32
    %82 = vector.broadcast %cst_33 : f32 to vector<8x256xf32>
    %83 = arith.maximumf %81, %82 : vector<8x256xf32>
    %c0_34 = arith.constant 0 : index
    %c0_35 = arith.constant 0 : index
    %84 = vector.load %arg6[%c0_34, %c0_35] : memref<8x256xf32, #tpu.memory_space<vmem>>, vector<8x256xf32>
    tpu.vector_store %arg6[%c0_34, %c0_35], %83 {strides = array<i32>} : memref<8x256xf32, #tpu.memory_space<vmem>>, vector<8x256xf32>,
    return
  }
  func.func @transform_0(%arg0: i32) -> (i32, i32) {
    %c0_i32 = arith.constant 0 : i32
    %c0_i32_0 = arith.constant 0 : i32
    return %c0_i32, %arg0 : i32, i32
  }
  func.func @transform_1(%arg0: i32) -> (i32, i32) {
    %c0_i32 = arith.constant 0 : i32
    %c0_i32_0 = arith.constant 0 : i32
    %c0_i32_1 = arith.constant 0 : i32
    return %c0_i32, %c0_i32_0 : i32, i32
  }
  func.func @transform_2(%arg0: i32) -> (i32, i32) {
    %c0_i32 = arith.constant 0 : i32
    %c0_i32_0 = arith.constant 0 : i32
    %c0_i32_1 = arith.constant 0 : i32
    return %c0_i32, %c0_i32_0 : i32, i32
  }
  func.func @transform_3(%arg0: i32) -> (i32, i32) {
    %c0_i32 = arith.constant 0 : i32
    %c0_i32_0 = arith.constant 0 : i32
    %c0_i32_1 = arith.constant 0 : i32
    return %c0_i32, %c0_i32_0 : i32, i32
  }
  func.func @transform_4(%arg0: i32) -> (i32, i32) {
    %c0_i32 = arith.constant 0 : i32
    %c0_i32_0 = arith.constant 0 : i32
    %c0_i32_1 = arith.constant 0 : i32
    return %c0_i32, %c0_i32_0 : i32, i32
  }
  func.func @transform_5(%arg0: i32) -> (i32, i32) {
    %c0_i32 = arith.constant 0 : i32
    %c0_i32_0 = arith.constant 0 : i32
    return %c0_i32, %arg0 : i32, i32
  }
}

</mosaic_0001>

<llo_original>
// kernel: tpu_custom_call.1
$region0: #{tpu_custom_call.1}
  #allocation0 [shape = 'u32[]', space=smem, size = 0x4, offset = 0x4, fixed_abs, tag = 'smem constant byte address 0x4 - core index']
  #allocation1 [shape = 'u32[144,128]{1,0:T(1,128)}', space=vmem, size = 0x12000, scoped, tag = 'internal scratch']
  %s0 = inlined_call_operand.vmem [shape: f32[4,256], index: 0, kind: input, shape index: {}]
  %s1 = inlined_call_operand.hbm [shape: f32[8,16], index: 1, kind: input, shape index: {}]
  %s2 = inlined_call_operand.hbm [shape: f32[8,24], index: 2, kind: input, shape index: {}]
  %s3 = inlined_call_operand.vmem [shape: f32[8,6], index: 3, kind: input, shape index: {}]
  %s4 = inlined_call_operand.vmem [shape: f32[8,4], index: 4, kind: input, shape index: {}]
  %s5 = inlined_call_operand.hbm [shape: f32[8,256], index: 5, kind: output, shape index: {}]
  %s6 = sld [smem:[#allocation0]]
  $region38: #{tpu_custom_call.1} parent=0
    _
  %s8 = ssub.s32 1, %s6
  %s9 = scalar_select 0, %s8, %s6
  $region1: #{tpu_custom_call.1} parent=0
    #allocation2 [shape = 'u8[4096]{0}', space=vmem, size = 0x1000, scoped, tag = 'input window, operand 1, single buffered']
    #allocation3 [shape = 's32[1]{0}', space=sflag, size = 0x4, scoped, tag = 'scoped memory for tpu_custom_call.1']
    #allocation4 [shape = 's32[1]{0}', space=sflag, size = 0x4, scoped, tag = 'scoped memory for tpu_custom_call.1']
    #allocation5 [shape = 'u8[4096]{0}', space=vmem, size = 0x1000, scoped, tag = 'input window, operand 2, single buffered']
    #allocation6 [shape = 's32[1]{0}', space=sflag, size = 0x4, scoped, tag = 'scoped memory for tpu_custom_call.1']
    #allocation7 [shape = 'u8[8192]{0}', space=vmem, size = 0x2000, scoped, tag = 'output window, operand 0, single buffered']
    %10 = vsyncpa [#allocation3], 0
    %11 = vsyncpa [#allocation6], 0
    %12 = vsyncpa [#allocation4], 0
    // Predicated region
    $region2: #{tpu_custom_call.1} parent=1 // pred_check
      _
    $region3: #{tpu_custom_call.1} parent=1 // pred_check_branch
      %14 = sbr.rel (0) target = $region5
    $region4: #{tpu_custom_call.1} parent=1 // pred_region
      _
    $region5: #{tpu_custom_call.1} parent=1 // pred_fallthru
      _
    // Predicated region
    $region6: #{tpu_custom_call.1} parent=1 // pred_check
      _
    $region7: #{tpu_custom_call.1} parent=1 // pred_check_branch
      %16 = sbr.rel (0) target = $region9
    $region8: #{tpu_custom_call.1} parent=1 // pred_region
      %s18 = ssub.s32 128, 128
      %19 = vsyncadd [#allocation3], %s18
      %s21 = sshll.u32 [#allocation2], 4
      %s22 = int_to_ptr.vmem [resolvable:$true] %s21
      %24 = dma.hbm_to_vmem [thread:$0]  %s1, 128, %s22, [#allocation3]
    $region9: #{tpu_custom_call.1} parent=1 // pred_fallthru
      _
    // Predicated region
    $region10: #{tpu_custom_call.1} parent=1 // pred_check
      _
    $region11: #{tpu_custom_call.1} parent=1 // pred_check_branch
      %26 = sbr.rel (0) target = $region13
    $region12: #{tpu_custom_call.1} parent=1 // pred_region
      %s28 = ssub.s32 128, 128
      %29 = vsyncadd [#allocation6], %s28
      %s31 = sshll.u32 [#allocation5], 4
      %s32 = int_to_ptr.vmem [resolvable:$true] %s31
      %34 = dma.hbm_to_vmem [thread:$0]  %s2, 128, %s32, [#allocation6]
    $region13: #{tpu_custom_call.1} parent=1 // pred_fallthru
      _
    // Predicated region
    $region14: #{tpu_custom_call.1} parent=1 // pred_check
      _
    $region15: #{tpu_custom_call.1} parent=1 // pred_check_branch
      %36 = sbr.rel (0) target = $region17
    $region16: #{tpu_custom_call.1} parent=1 // pred_region
      _
    $region17: #{tpu_custom_call.1} parent=1 // pred_fallthru
      _
    // Predicated region
    $region18: #{tpu_custom_call.1} parent=1 // pred_check
      _
    $region19: #{tpu_custom_call.1} parent=1 // pred_check_branch
      %38 = sbr.rel (0) target = $region21
    $region20: #{tpu_custom_call.1} parent=1 // pred_region
      _
    $region21: #{tpu_custom_call.1} parent=1 // pred_fallthru
      _
    // Predicated region
    $region22: #{tpu_custom_call.1} parent=1 // pred_check
      _
    $region23: #{tpu_custom_call.1} parent=1 // pred_check_branch
      %40 = sbr.rel (0) target = $region25
    $region24: #{tpu_custom_call.1} parent=1 // pred_region
      %41 = dma.done [#allocation3], 128
    $region25: #{tpu_custom_call.1} parent=1 // pred_fallthru
      _
    // Predicated region
    $region26: #{tpu_custom_call.1} parent=1 // pred_check
      _
    $region27: #{tpu_custom_call.1} parent=1 // pred_check_branch
      %43 = sbr.rel (0) target = $region29
    $region28: #{tpu_custom_call.1} parent=1 // pred_region
      %44 = dma.done [#allocation6], 128
    $region29: #{tpu_custom_call.1} parent=1 // pred_fallthru
      _
    %v45 = vld [vmem:[%s0] sm:$0xff]
    %v46 = vlaneseq
    %v47 = vand.u32 %v46, 127
    %v48 = vadd.s32 %v47, 128
    %vm49 = vcmp.lt.s32.totalorder %v47, 0
    %v50 = vsub.s32 0, %v47
    %v51 = vsel %vm49, %v50, %v47
    %v52 = vshrl.u32 %v51, 7
    %v53 = vand.u32 %v51, 127
    %v54 = vsub.s32 0, %v53
    %v55 = vsel %vm49, %v54, %v53
    %vm56 = vcmp.lt.s32.totalorder %v48, 0
    %v57 = vsub.s32 0, %v48
    %v58 = vsel %vm56, %v57, %v48
    %v59 = vshrl.u32 %v58, 7
    %v60 = vand.u32 %v58, 127
    %v61 = vsub.s32 0, %v60
    %v62 = vsel %vm56, %v61, %v60
    %vm63 = vcmp.ne.s32.totalorder %v55, 0
    %vm64 = vcmp.ne.s32.totalorder %v62, 0
    %vm65 = vcmp.lt.s32.totalorder %v55, 0
    %vm66 = vcmp.lt.s32.totalorder %v62, 0
    %vm67 = vmand %vm65, %vm63
    %vm68 = vmand %vm66, %vm64
    %v69 = vadd.s32 %v55, 128
    %v70 = vadd.s32 %v62, 128
    %v71 = vsel %vm67, %v69, %v55
    %v72 = vsel %vm68, %v70, %v62
    %v73 = vsub.s32 %v71, 1
    %v74 = vsub.s32 %v72, 1
    %vm75 = vcmp.ge.s32.totalorder %v73, 0
    %vm76 = vcmp.ge.s32.totalorder %v74, 0
    %vm77 = vcmp.lt.s32.totalorder %v73, 128
    %vm78 = vcmp.lt.s32.totalorder %v74, 128
    %vm79 = vmand %vm75, %vm77
    %vm80 = vmand %vm76, %vm78
    %v81 = vsub.s32 %v71, 4294967295
    %v82 = vsub.s32 %v72, 4294967295
    %vm83 = vcmp.ge.s32.totalorder %v81, 0
    %vm84 = vcmp.ge.s32.totalorder %v82, 0
    %vm85 = vcmp.lt.s32.totalorder %v81, 128
    %vm86 = vcmp.lt.s32.totalorder %v82, 128
    %vm87 = vmand %vm83, %vm85
    %vm88 = vmand %vm84, %vm86
    %v89 = vld [vmem:[#allocation2] sm:$0xff]
    %v91 = vcombine.high %v45, %v45
    %93 = vrot.lane.b32.xlu0 %v45, 1
    %v94 = vpop.permute.xlu0 %93
    %95 = vrot.lane.b32.xlu0 %v91, 1
    %v96 = vpop.permute.xlu0 %95
    %vm97 = vcmp.lt.s32.totalorder %v47, 1
    %v98 = vsel %vm97, %v94, %v96
    %v99 = vsel %vm97, %v96, %v94
    %v100 = vsel %vm79, 1, 0
    %v101 = vsel %vm80, 1, 0
    %vm102 = vcmp.eq.s32.totalorder %v100, 1
    %vm103 = vcmp.eq.s32.totalorder %v101, 1
    %v104 = vsel %vm102, %v99, 0.0
    %v105 = vsel %vm103, %v98, 0.0
    %106 = vrot.lane.b32.xlu0 %v45, 127
    %v107 = vpop.permute.xlu0 %106
    %108 = vrot.lane.b32.xlu0 %v91, 127
    %v109 = vpop.permute.xlu0 %108
    %vm110 = vcmp.lt.s32.totalorder %v47, 127
    %v111 = vsel %vm110, %v107, %v109
    %v112 = vsel %vm110, %v109, %v107
    %v113 = vsel %vm87, 1, 0
    %v114 = vsel %vm88, 1, 0
    %vm115 = vcmp.eq.s32.totalorder %v113, 1
    %vm116 = vcmp.eq.s32.totalorder %v114, 1
    %v117 = vsel %vm115, %v111, 0.0
    %v118 = vsel %vm116, %v112, 0.0
    %v119 = vcombine.low %v45, %v45
    %vm121 = vcmask 1043456
    %v122 = vsel %vm121, %v104, %v119
    %v123 = vsel %vm121, %v105, %v45
    %v124 = vsel %vm121, %v117, 0.0
    %v125 = vsel %vm121, %v118, 0.0
    %vm126 = vcmask 130048
    %v128 = vsel %vm126, %v89, 0
    %130 = vmatprep.subr.mxu0 0.0
    %131 = vmatpush1.msra.mxu0 0.0
    %132 = vmatprep.subr.mxu0 0.0
    %133 = vmatpush1.msra.mxu0 0.0
    %134 = vmatprep.subr.mxu0 0.0
    %135 = vmatpush1.msra.mxu0 0.0
    %136 = vmatprep.subr.mxu0 0.0
    %137 = vmatpush1.msra.mxu0 0.0
    %138 = vmatprep.subr.mxu0 0.0
    %139 = vmatpush1.msra.mxu0 0.0
    %140 = vmatprep.subr.mxu0 0.0
    %141 = vmatpush1.msra.mxu0 0.0
    %142 = vmatprep.subr.mxu0 0.0
    %143 = vmatpush1.msra.mxu0 0.0
    %144 = vmatprep.subr.mxu0 0.0
    %145 = vmatpush1.msra.mxu0 0.0
    %146 = vmatprep.subr.mxu0 0.0
    %147 = vmatpush1.msra.mxu0 0.0
    %148 = vmatprep.subr.mxu0 0.0
    %149 = vmatpush1.msra.mxu0 0.0
    %150 = vmatprep.subr.mxu0 0.0
    %151 = vmatpush1.msra.mxu0 0.0
    %152 = vmatprep.subr.mxu0 0.0
    %153 = vmatpush1.msra.mxu0 0.0
    %154 = vmatprep.subr.mxu0 0.0
    %155 = vmatpush1.msra.mxu0 0.0
    %156 = vmatprep.subr.mxu0 0.0
    %157 = vmatpush1.msra.mxu0 0.0
    %158 = vmatprep.subr.mxu0 %v125
    %159 = vmatpush1.msra.mxu0 %v124
    %160 = vmatprep.subr.mxu0 %v123
    %161 = vmatpush1.msra.mxu0 %v122
    %162 = vmatprep.subr.mxu0 0.0
    %163 = vmatpush2.msra.mxu0 0.0
    %164 = vmatprep.subr.mxu0 0.0
    %165 = vmatpush2.msra.mxu0 0.0
    %166 = vmatprep.subr.mxu0 0.0
    %167 = vmatpush2.msra.mxu0 0.0
    %168 = vmatprep.subr.mxu0 0.0
    %169 = vmatpush2.msra.mxu0 0.0
    %170 = vmatprep.subr.mxu0 0.0
    %171 = vmatpush2.msra.mxu0 0.0
    %172 = vmatprep.subr.mxu0 0.0
    %173 = vmatpush2.msra.mxu0 0.0
    %174 = vmatprep.subr.mxu0 0.0
    %175 = vmatpush2.msra.mxu0 0.0
    %176 = vmatprep.subr.mxu0 0.0
    %177 = vmatpush2.msra.mxu0 0.0
    %178 = vmatprep.subr.mxu0 0.0
    %179 = vmatpush2.msra.mxu0 0.0
    %180 = vmatprep.subr.mxu0 0.0
    %181 = vmatpush2.msra.mxu0 0.0
    %182 = vmatprep.subr.mxu0 0.0
    %183 = vmatpush2.msra.mxu0 0.0
    %184 = vmatprep.subr.mxu0 0.0
    %185 = vmatpush2.msra.mxu0 0.0
    %186 = vmatprep.subr.mxu0 0.0
    %187 = vmatpush2.msra.mxu0 0.0
    %188 = vmatprep.subr.mxu0 0.0
    %189 = vmatpush2.msra.mxu0 0.0
    %190 = vmatprep.subr.mxu0 0.0
    %191 = vmatpush2.msra.mxu0 0.0
    %192 = vmatprep.subr.mxu0 0.0
    %193 = vmatpush2.msra.mxu0 0.0
    %194 = vmatprep.mubr.f32.mxu0 0.0
    %195 = vmatmul.mubr.f32.gmra.mxu0 %v128
    %v196 = vpop.f32.mrf.mxu0
    %v197 = vadd.f32 0.0, %v196
    %v198 = vpop.f32.mrf.mxu0
    %v199 = vadd.f32 0.0, %v198
    %200 = vdwg.mxu0
    %v201 = vld [vmem:[%s3] sm:$0xff]
    %203 = vset.pattern.permute.xlu0 0
    %204 = vperm.xlu0 %203, %v201
    %v205 = vpop.permute.xlu0 %204
    %v207 = vmul.f32 %v197, %v205
    %v208 = vmul.f32 %v199, %v205
    %209 = vset.pattern.permute.xlu0 1
    %210 = vperm.xlu0 %209, %v201
    %v211 = vpop.permute.xlu0 %210
    %v213 = vadd.f32 %v207, %v211
    %v214 = vadd.f32 %v208, %v211
    %v215 = vmax.f32 %v213, 0.0
    %v216 = vmax.f32 %v214, 0.0
    %v217 = vld [vmem:[#allocation5] sm:$0xff]
    %218 = vrot.lane.b32.xlu0 %v215, 1
    %v219 = vpop.permute.xlu0 %218
    %220 = vrot.lane.b32.xlu0 %v216, 1
    %v221 = vpop.permute.xlu0 %220
    %v222 = vsel %vm97, %v219, %v221
    %v223 = vsel %vm97, %v221, %v219
    %v224 = vsel %vm102, %v223, 0.0
    %v225 = vsel %vm103, %v222, 0.0
    %226 = vrot.lane.b32.xlu0 %v215, 127
    %v227 = vpop.permute.xlu0 %226
    %228 = vrot.lane.b32.xlu0 %v216, 127
    %v229 = vpop.permute.xlu0 %228
    %v230 = vsel %vm110, %v227, %v229
    %v231 = vsel %vm110, %v229, %v227
    %v232 = vsel %vm115, %v230, 0.0
    %v233 = vsel %vm116, %v231, 0.0
    %vm234 = vcmask 195584
    %v236 = vsel %vm234, %v217, 0
    %238 = vmatprep.subr.mxu0 0.0
    %239 = vmatpush1.msra.mxu0 0.0
    %240 = vmatprep.subr.mxu0 0.0
    %241 = vmatpush1.msra.mxu0 0.0
    %242 = vmatprep.subr.mxu0 0.0
    %243 = vmatpush1.msra.mxu0 0.0
    %244 = vmatprep.subr.mxu0 0.0
    %245 = vmatpush1.msra.mxu0 0.0
    %246 = vmatprep.subr.mxu0 0.0
    %247 = vmatpush1.msra.mxu0 0.0
    %248 = vmatprep.subr.mxu0 0.0
    %249 = vmatpush1.msra.mxu0 0.0
    %250 = vmatprep.subr.mxu0 0.0
    %251 = vmatpush1.msra.mxu0 0.0
    %252 = vmatprep.subr.mxu0 0.0
    %253 = vmatpush1.msra.mxu0 0.0
    %254 = vmatprep.subr.mxu0 0.0
    %255 = vmatpush1.msra.mxu0 0.0
    %256 = vmatprep.subr.mxu0 0.0
    %257 = vmatpush1.msra.mxu0 0.0
    %258 = vmatprep.subr.mxu0 0.0
    %259 = vmatpush1.msra.mxu0 0.0
    %260 = vmatprep.subr.mxu0 0.0
    %261 = vmatpush1.msra.mxu0 0.0
    %262 = vmatprep.subr.mxu0 0.0
    %263 = vmatpush1.msra.mxu0 0.0
    %264 = vmatprep.subr.mxu0 %v233
    %265 = vmatpush1.msra.mxu0 %v232
    %266 = vmatprep.subr.mxu0 %v216
    %267 = vmatpush1.msra.mxu0 %v215
    %268 = vmatprep.subr.mxu0 %v225
    %269 = vmatpush1.msra.mxu0 %v224
    %270 = vmatprep.subr.mxu0 0.0
    %271 = vmatpush2.msra.mxu0 0.0
    %272 = vmatprep.subr.mxu0 0.0
    %273 = vmatpush2.msra.mxu0 0.0
    %274 = vmatprep.subr.mxu0 0.0
    %275 = vmatpush2.msra.mxu0 0.0
    %276 = vmatprep.subr.mxu0 0.0
    %277 = vmatpush2.msra.mxu0 0.0
    %278 = vmatprep.subr.mxu0 0.0
    %279 = vmatpush2.msra.mxu0 0.0
    %280 = vmatprep.subr.mxu0 0.0
    %281 = vmatpush2.msra.mxu0 0.0
    %282 = vmatprep.subr.mxu0 0.0
    %283 = vmatpush2.msra.mxu0 0.0
    %284 = vmatprep.subr.mxu0 0.0
    %285 = vmatpush2.msra.mxu0 0.0
    %286 = vmatprep.subr.mxu0 0.0
    %287 = vmatpush2.msra.mxu0 0.0
    %288 = vmatprep.subr.mxu0 0.0
    %289 = vmatpush2.msra.mxu0 0.0
    %290 = vmatprep.subr.mxu0 0.0
    %291 = vmatpush2.msra.mxu0 0.0
    %292 = vmatprep.subr.mxu0 0.0
    %293 = vmatpush2.msra.mxu0 0.0
    %294 = vmatprep.subr.mxu0 0.0
    %295 = vmatpush2.msra.mxu0 0.0
    %296 = vmatprep.subr.mxu0 0.0
    %297 = vmatpush2.msra.mxu0 0.0
    %298 = vmatprep.subr.mxu0 0.0
    %299 = vmatpush2.msra.mxu0 0.0
    %300 = vmatprep.subr.mxu0 0.0
    %301 = vmatpush2.msra.mxu0 0.0
    %302 = vmatprep.mubr.f32.mxu0 0.0
    %303 = vmatmul.mubr.f32.gmra.mxu0 %v236
    %v304 = vpop.f32.mrf.mxu0
    %v305 = vadd.f32 0.0, %v304
    %v306 = vpop.f32.mrf.mxu0
    %v307 = vadd.f32 0.0, %v306
    %308 = vdwg.mxu0
    %309 = vset.pattern.permute.xlu0 2
    %310 = vperm.xlu0 %309, %v201
    %v311 = vpop.permute.xlu0 %310
    %v313 = vmul.f32 %v305, %v311
    %v314 = vmul.f32 %v307, %v311
    %315 = vset.pattern.permute.xlu0 3
    %316 = vperm.xlu0 %315, %v201
    %v317 = vpop.permute.xlu0 %316
    %v319 = vadd.f32 %v313, %v317
    %v320 = vadd.f32 %v314, %v317
    %v321 = vld [vmem:[%s4] sm:$0xff]
    %vm322 = vcmask 31744
    %v324 = vsel %vm322, %v321, 0
    %v326 = vsel %vm121, %v45, 0
    %v328 = vsel %vm121, %v91, 0
    %330 = vmatprep.subr.mxu0 0.0
    %331 = vmatpush1.msra.mxu0 0.0
    %332 = vmatprep.subr.mxu0 0.0
    %333 = vmatpush1.msra.mxu0 0.0
    %334 = vmatprep.subr.mxu0 0.0
    %335 = vmatpush1.msra.mxu0 0.0
    %336 = vmatprep.subr.mxu0 0.0
    %337 = vmatpush1.msra.mxu0 0.0
    %338 = vmatprep.subr.mxu0 0.0
    %339 = vmatpush1.msra.mxu0 0.0
    %340 = vmatprep.subr.mxu0 0.0
    %341 = vmatpush1.msra.mxu0 0.0
    %342 = vmatprep.subr.mxu0 0.0
    %343 = vmatpush1.msra.mxu0 0.0
    %344 = vmatprep.subr.mxu0 0.0
    %345 = vmatpush1.msra.mxu0 0.0
    %346 = vmatprep.subr.mxu0 0.0
    %347 = vmatpush1.msra.mxu0 0.0
    %348 = vmatprep.subr.mxu0 0.0
    %349 = vmatpush1.msra.mxu0 0.0
    %350 = vmatprep.subr.mxu0 0.0
    %351 = vmatpush1.msra.mxu0 0.0
    %352 = vmatprep.subr.mxu0 0.0
    %353 = vmatpush1.msra.mxu0 0.0
    %354 = vmatprep.subr.mxu0 0.0
    %355 = vmatpush1.msra.mxu0 0.0
    %356 = vmatprep.subr.mxu0 0.0
    %357 = vmatpush1.msra.mxu0 0.0
    %358 = vmatprep.subr.mxu0 0.0
    %359 = vmatpush1.msra.mxu0 0.0
    %360 = vmatprep.subr.mxu0 %v328
    %361 = vmatpush1.msra.mxu0 %v326
    %362 = vmatprep.subr.mxu0 0.0
    %363 = vmatpush2.msra.mxu0 0.0
    %364 = vmatprep.subr.mxu0 0.0
    %365 = vmatpush2.msra.mxu0 0.0
    %366 = vmatprep.subr.mxu0 0.0
    %367 = vmatpush2.msra.mxu0 0.0
    %368 = vmatprep.subr.mxu0 0.0
    %369 = vmatpush2.msra.mxu0 0.0
    %370 = vmatprep.subr.mxu0 0.0
    %371 = vmatpush2.msra.mxu0 0.0
    %372 = vmatprep.subr.mxu0 0.0
    %373 = vmatpush2.msra.mxu0 0.0
    %374 = vmatprep.subr.mxu0 0.0
    %375 = vmatpush2.msra.mxu0 0.0
    %376 = vmatprep.subr.mxu0 0.0
    %377 = vmatpush2.msra.mxu0 0.0
    %378 = vmatprep.subr.mxu0 0.0
    %379 = vmatpush2.msra.mxu0 0.0
    %380 = vmatprep.subr.mxu0 0.0
    %381 = vmatpush2.msra.mxu0 0.0
    %382 = vmatprep.subr.mxu0 0.0
    %383 = vmatpush2.msra.mxu0 0.0
    %384 = vmatprep.subr.mxu0 0.0
    %385 = vmatpush2.msra.mxu0 0.0
    %386 = vmatprep.subr.mxu0 0.0
    %387 = vmatpush2.msra.mxu0 0.0
    %388 = vmatprep.subr.mxu0 0.0
    %389 = vmatpush2.msra.mxu0 0.0
    %390 = vmatprep.subr.mxu0 0.0
    %391 = vmatpush2.msra.mxu0 0.0
    %392 = vmatprep.subr.mxu0 0.0
    %393 = vmatpush2.msra.mxu0 0.0
    %394 = vmatprep.mubr.f32.mxu0 0.0
    %395 = vmatmul.mubr.f32.gmra.mxu0 %v324
    %v396 = vpop.f32.mrf.mxu0
    %v397 = vadd.f32 0.0, %v396
    %v398 = vpop.f32.mrf.mxu0
    %v399 = vadd.f32 0.0, %v398
    %400 = vdwg.mxu0
    %v401 = vld [vmem:[%s3] sm:$0xff]
    %403 = vset.pattern.permute.xlu0 4
    %404 = vperm.xlu0 %403, %v401
    %v405 = vpop.permute.xlu0 %404
    %v407 = vmul.f32 %v397, %v405
    %v408 = vmul.f32 %v399, %v405
    %409 = vset.pattern.permute.xlu0 5
    %410 = vperm.xlu0 %409, %v401
    %v411 = vpop.permute.xlu0 %410
    %v413 = vadd.f32 %v407, %v411
    %v414 = vadd.f32 %v408, %v411
    %v415 = vadd.f32 %v319, %v413
    %v416 = vadd.f32 %v320, %v414
    %v417 = vmax.f32 %v415, 0.0
    %v418 = vmax.f32 %v416, 0.0
    %419 = vst [vmem:[#allocation7] sm:$0xff] %v417
    %420 = vst [vmem:[#allocation7 + $0x8] sm:$0xff] %v418
    // Predicated region
    $region30: #{tpu_custom_call.1} parent=1 // pred_check
      _
    $region31: #{tpu_custom_call.1} parent=1 // pred_check_branch
      %422 = sbr.rel (0) target = $region33
    $region32: #{tpu_custom_call.1} parent=1 // pred_region
      %s424 = ssub.s32 256, 256
      %425 = vsyncadd [#allocation4], %s424
      %s427 = sshll.u32 [#allocation7], 4
      %s428 = int_to_ptr.vmem [resolvable:$true] %s427
      %430 = dma.vmem_to_hbm [thread:$0]  %s428, 256, %s5, [#allocation4]
    $region33: #{tpu_custom_call.1} parent=1 // pred_fallthru
      _
    // Predicated region
    $region34: #{tpu_custom_call.1} parent=1 // pred_check
      _
    $region35: #{tpu_custom_call.1} parent=1 // pred_check_branch
      %432 = sbr.rel (0) target = $region37
    $region36: #{tpu_custom_call.1} parent=1 // pred_region
      %433 = dma.done [#allocation4], 256
    $region37: #{tpu_custom_call.1} parent=1 // pred_fallthru
      _
    %434 = vsyncpa [#allocation3], 1
    %435 = vsyncpa [#allocation6], 1
    %436 = vsyncpa [#allocation4], 1

</llo_original>
